<compile_context>
chip_gen: v5e
topology: v5e:2x2
jax: 0.10.0
libtpu: 0.0.40
codegen_flags: <defaults>
</compile_context>

<pallas_src>
import functools

import jax
import jax.numpy as jnp
from jax import lax
from jax.experimental import pallas as pl
from jax.experimental.pallas import tpu as pltpu


def _dsconv_kernel(x_ref, w_ref, b_ref, o_ref, *, shift_down):
    # x_ref : (1, TH, K)   bf16   fused (KH-row) input slab, lane-dense
    # w_ref : (K, TN)      bf16   banded conv weights (taps fused along K)
    # b_ref : (1, TN)      f32    bias tiled along W
    # o_ref : (1, TH, TN)         output row/column block
    acc = jnp.dot(x_ref[0], w_ref[...], preferred_element_type=jnp.float32)
    acc = acc + b_ref[...]                      # (1, TN) broadcast over (TH, TN)
    if shift_down:
        # down_shift folded in: global output row 0 is exactly zero (no bias).
        first_row_block = pl.program_id(1) == 0
        rows = lax.broadcasted_iota(jnp.int32, acc.shape, 0)
        acc = jnp.where(jnp.logical_and(first_row_block, rows == 0), 0.0, acc)
    o_ref[0] = acc.astype(o_ref.dtype)


def _pick_row_tile(H):
    if H <= 128:
        return H                                # full-extent block (always legal)
    start = (min(H, 256) // 8) * 8
    for th in range(start, 7, -8):
        if H % th == 0:
            return th
    return H


def _pick_col_tile(WC):
    if WC <= 512:
        return WC
    for tn in (512, 384, 256, 128):
        if WC % tn == 0:
            return tn
    return WC


def _vmem_cap_bytes():
    try:
        info = pltpu.get_tpu_info()
        cap = getattr(info, "vmem_capacity_bytes", None)
        if cap:
            return int(cap)
    except Exception:
        pass
    return 64 << 20                             # conservative (v7x)


def down_shifted_conv2d_pallas(x_nchw, v, g, bias, *, shift_output_down=False,
                               out_dtype=jnp.float32):
    """Forward pass of down_shifted_conv2d with weight_norm.

    x_nchw : (N, Cin, H, W) float32
    v      : (Cout, Cin, KH, KW)  weight_norm direction parameter
    g      : (Cout,)              weight_norm magnitude parameter
    bias   : (Cout,)
    returns: (N, Cout, H, W) in `out_dtype` (bf16 also supported to halve
             output HBM traffic if downstream tolerates it).
    """
    N, Cin, H, W = x_nchw.shape
    Cout, _, KH, KW = v.shape

    pad_w = (KW - 1) // 2
    Hp, Wp = H + (KH - 1), W + 2 * pad_w
    WpC, WC = Wp * Cin, W * Cout
    K = KH * WpC                                 # fused contraction dim

    # --- glue: weight_norm reparametrization (per output channel, dim=0) ---
    v32 = v.astype(jnp.float32)
    v_norm = jnp.sqrt(jnp.sum(v32 * v32, axis=(1, 2, 3), keepdims=True))
    w = g.astype(jnp.float32).reshape(Cout, 1, 1, 1) * v32 / v_norm
    w_hwio = jnp.transpose(w, (2, 3, 1, 0))      # (KH, KW, Cin, Cout)

    # --- glue (one-time): banded weight matrix, taps fused along K:
    #     B[kh*WpC + wp*Cin + ci, w*Cout + co] = w_hwio[kh, wp-w, ci, co]
    #     (0 if wp-w outside [0, KW)).
    wp_idx = jnp.arange(Wp)[:, None]
    w_idx = jnp.arange(W)[None, :]
    kw_idx = wp_idx - w_idx                      # (Wp, W)
    valid = (kw_idx >= 0) & (kw_idx < KW)
    kw_c = jnp.clip(kw_idx, 0, KW - 1)
    Bg = w_hwio[:, kw_c, :, :]                   # (KH, Wp, W, Cin, Cout)
    Bg = jnp.where(valid[None, :, :, None, None], Bg, 0.0)
    B = jnp.transpose(Bg, (0, 1, 3, 2, 4)).reshape(K, WC).astype(jnp.bfloat16)

    # --- glue: NCHW -> padded, row-flattened NHWC; the down-shift is folded in
    #     by padding one extra row on top; KH taps fused into one K-wide slab.
    x_nhwc = jnp.transpose(x_nchw, (0, 2, 3, 1))                  # (N,H,W,Cin)
    top = KH if shift_output_down else KH - 1
    x_pad = jnp.pad(x_nhwc, ((0, 0), (top, 0), (pad_w, pad_w), (0, 0)))[:, :Hp]
    x_flat = x_pad.reshape(N, Hp, WpC)
    xx = jnp.concatenate([x_flat[:, kh:kh + H, :] for kh in range(KH)], axis=-1)
    xx = xx.astype(jnp.bfloat16)                                  # (N, H, K)

    bias_row = jnp.tile(bias.astype(jnp.float32), W).reshape(1, WC)

    TH = _pick_row_tile(H)                       # M-fill: TH=H when H<=128
    TN = _pick_col_tile(WC)                      # keeps B's VMEM block bounded

    # Single-buffer the weight/bias when their block index is grid-invariant.
    if TN == WC:
        w_spec = pl.BlockSpec((K, TN), lambda n, h, j: (0, j),
                              pipeline_mode=pl.Buffered(1))
        bias_spec = pl.BlockSpec((1, TN), lambda n, h, j: (0, j),
                                 pipeline_mode=pl.Buffered(1))
        w_bufs = 1
    else:
        w_spec = pl.BlockSpec((K, TN), lambda n, h, j: (0, j))
        bias_spec = pl.BlockSpec((1, TN), lambda n, h, j: (0, j))
        w_bufs = 2

    # Explicit VMEM budget from the actual block sizes, capped at ~85% of the
    # part's physical VMEM (64 MiB on v7x, 128 MiB on v5e/v6e).
    out_isz = jnp.dtype(out_dtype).itemsize
    needed = (2 * TH * K * 2                     # xx block, double-buffered
              + w_bufs * K * TN * 2              # banded weights
              + w_bufs * TN * 4                  # bias
              + 2 * TH * TN * out_isz            # output block, double-buffered
              + (2 << 20))                       # headroom for compiler scratch
    vmem_limit = int(min(max(needed, 16 << 20), int(0.85 * _vmem_cap_bytes())))

    kernel = functools.partial(_dsconv_kernel, shift_down=shift_output_down)

    out_flat = pl.pallas_call(
        kernel,
        out_shape=jax.ShapeDtypeStruct((N, H, WC), out_dtype),
        grid_spec=pltpu.PrefetchScalarGridSpec(
            num_scalar_prefetch=0,
            grid=(N, H // TH, WC // TN),
            in_specs=[
                pl.BlockSpec((1, TH, K), lambda n, h, j: (n, h, 0)),
                w_spec,
                bias_spec,
            ],
            out_specs=pl.BlockSpec((1, TH, TN), lambda n, h, j: (n, h, j)),
        ),
        compiler_params=pltpu.CompilerParams(
            dimension_semantics=("parallel", "parallel", "parallel"),
            vmem_limit_bytes=vmem_limit),
    )(xx, B, bias_row)

    # glue: back to the module's NCHW interface.
    out = out_flat.reshape(N, H, W, Cout).transpose(0, 3, 1, 2)
    return out


def _reference(x_nchw, v, g, bias, *, shift_output_down=False):
    """Pure-JAX f32 reference (same math as the PyTorch module)."""
    Cout = v.shape[0]
    v_norm = jnp.sqrt(jnp.sum(v ** 2, axis=(1, 2, 3), keepdims=True))
    w = g.reshape(Cout, 1, 1, 1) * v / v_norm
    KH, KW = w.shape[2], w.shape[3]
    pad_w = (KW - 1) // 2
    x_pad = jnp.pad(x_nchw, ((0, 0), (0, 0), (KH - 1, 0), (pad_w, pad_w)))
    out = lax.conv_general_dilated(
        x_pad, w, window_strides=(1, 1), padding="VALID",
        dimension_numbers=("NCHW", "OIHW", "NCHW"))
    out = out + bias.reshape(1, Cout, 1, 1)
    if shift_output_down:
        H = out.shape[2]
        out = jnp.pad(out[:, :, :H - 1, :], ((0, 0), (0, 0), (1, 0), (0, 0)))
    return out


if __name__ == "__main__":
    key = jax.random.PRNGKey(0)
    k1, k2, k3 = jax.random.split(key, 3)

    N, Cin, H, W = 2, 4, 16, 16
    Cout, KH, KW = 8, 2, 3

    x = jax.random.normal(k1, (N, Cin, H, W), dtype=jnp.float32)
    v = jax.random.normal(k2, (Cout, Cin, KH, KW), dtype=jnp.float32) * 0.1
    # weight_norm init: g = ||v|| per output channel (matches PyTorch wn init)
    g = jnp.sqrt(jnp.sum(v ** 2, axis=(1, 2, 3)))
    bias = jax.random.normal(k3, (Cout,), dtype=jnp.float32) * 0.01

    # Default path (shift_output_down=False).
    fwd = jax.jit(functools.partial(down_shifted_conv2d_pallas,
                                    shift_output_down=False))
    out = jax.block_until_ready(fwd(x, v, g, bias))
    ref = _reference(x, v, g, bias, shift_output_down=False)
    assert out.shape == (N, Cout, H, W)
    err = float(jnp.max(jnp.abs(out - ref)))
    assert jnp.allclose(out, ref, rtol=2e-2, atol=2e-2), err

    # shift_output_down=True path (folded into padding + in-kernel row-0 mask).
    fwd_s = jax.jit(functools.partial(down_shifted_conv2d_pallas,
                                      shift_output_down=True))
    out_s = jax.block_until_ready(fwd_s(x, v, g, bias))
    ref_s = _reference(x, v, g, bias, shift_output_down=True)
    err_s = float(jnp.max(jnp.abs(out_s - ref_s)))
    assert jnp.allclose(out_s, ref_s, rtol=2e-2, atol=2e-2), err_s

    print("KERNEL_OK")
</pallas_src>

<mosaic_0001>
module attributes {stable_mosaic.version = 11 : i64} {
  func.func @_dsconv_kernel(%arg0: i32, %arg1: i32, %arg2: i32, %arg3: memref<1x16x144xbf16, #tpu.memory_space<vmem>>, %arg4: memref<144x128xbf16, #tpu.memory_space<vmem>>, %arg5: memref<1x128xf32, #tpu.memory_space<vmem>>, %arg6: memref<1x16x128xf32, #tpu.memory_space<vmem>>) attributes {dimension_semantics = [#tpu.dimension_semantics<parallel>, #tpu.dimension_semantics<parallel>, #tpu.dimension_semantics<parallel>], iteration_bounds = array<i64: 2, 1, 1>, scalar_prefetch = 0 : i64, scratch_operands = 0 : i64, tpu.core_type = #tpu.core_type<tc>, window_params = [{transform_indices = @transform_0, window_bounds = array<i64: 1, 16, 144>}, {pipeline_mode = #tpu.pipeline_mode<synchronous>, transform_indices = @transform_1, window_bounds = array<i64: 144, 128>}, {pipeline_mode = #tpu.pipeline_mode<synchronous>, transform_indices = @transform_2, window_bounds = array<i64: 1, 128>}, {transform_indices = @transform_3, window_bounds = array<i64: 1, 16, 128>}]} {
    %c0 = arith.constant 0 : index
    %c0_0 = arith.constant 0 : index
    %c0_1 = arith.constant 0 : index
    %0 = vector.load %arg3[%c0, %c0_0, %c0_1] : memref<1x16x144xbf16, #tpu.memory_space<vmem>>, vector<1x16x144xbf16>
    %1 = vector.shape_cast %0 : vector<1x16x144xbf16> to vector<16x144xbf16>
    %c0_2 = arith.constant 0 : index
    %c0_3 = arith.constant 0 : index
    %2 = vector.load %arg4[%c0_2, %c0_3] : memref<144x128xbf16, #tpu.memory_space<vmem>>, vector<144x128xbf16>
    %cst = arith.constant dense<0.000000e+00> : vector<16x128xf32>
    %3 = tpu.matmul %1, %2, %cst {dimension_numbers = #tpu.dot_dimension_numbers<[1], [0], [0], [1], [0, 0, 1, 1], [], []>} : vector<16x144xbf16>, vector<144x128xbf16>, vector<16x128xf32> -> vector<16x128xf32>
    %c0_4 = arith.constant 0 : index
    %c0_5 = arith.constant 0 : index
    %4 = vector.load %arg5[%c0_4, %c0_5] : memref<1x128xf32, #tpu.memory_space<vmem>>, vector<1x128xf32>
    %5 = vector.broadcast %4 : vector<1x128xf32> to vector<16x128xf32>
    %6 = arith.addf %3, %5 : vector<16x128xf32>
    %c0_6 = arith.constant 0 : index
    %c0_7 = arith.constant 0 : index
    %c0_8 = arith.constant 0 : index
    %7 = vector.load %arg6[%c0_6, %c0_7, %c0_8] : memref<1x16x128xf32, #tpu.memory_space<vmem>>, vector<1x16x128xf32>
    %8 = vector.shape_cast %7 : vector<1x16x128xf32> to vector<16x128xf32>
    %9 = vector.shape_cast %6 : vector<16x128xf32> to vector<1x16x128xf32>
    tpu.vector_store %arg6[%c0_6, %c0_7, %c0_8], %9 {strides = array<i32>} : memref<1x16x128xf32, #tpu.memory_space<vmem>>, vector<1x16x128xf32>,
    return
  }
  func.func @transform_0(%arg0: i32, %arg1: i32, %arg2: i32) -> (i32, i32, i32) {
    %c0_i32 = arith.constant 0 : i32
    %c0_i32_0 = arith.constant 0 : i32
    return %arg0, %arg1, %c0_i32 : i32, i32, i32
  }
  func.func @transform_1(%arg0: i32, %arg1: i32, %arg2: i32) -> (i32, i32) {
    %c0_i32 = arith.constant 0 : i32
    %c0_i32_0 = arith.constant 0 : i32
    return %c0_i32, %arg2 : i32, i32
  }
  func.func @transform_2(%arg0: i32, %arg1: i32, %arg2: i32) -> (i32, i32) {
    %c0_i32 = arith.constant 0 : i32
    %c0_i32_0 = arith.constant 0 : i32
    return %c0_i32, %arg2 : i32, i32
  }
  func.func @transform_3(%arg0: i32, %arg1: i32, %arg2: i32) -> (i32, i32, i32) {
    %c0_i32 = arith.constant 0 : i32
    return %arg0, %arg1, %arg2 : i32, i32, i32
  }
}

</mosaic_0001>

<llo_original>
// kernel: tile.8
$region0: #{tile.8}
  #allocation0 [shape = 's32[1]{0}', space=sflag, size = 0x4, scoped, tag = 'scoped memory for tile.8']
  %s0 = inlined_call_operand.vmem [shape: f32[8], index: 0, kind: input, shape index: {}]
  %s1 = inlined_call_operand.vmem [shape: f32[16,8], index: 1, kind: output, shape index: {}]
  // Predicated region
  $region2: #{tile.8} parent=0 // pred_check
    _
  $region3: #{tile.8} parent=0 // pred_check_branch
    %3 = sbr.rel (0) target = $region5
  $region4: #{tile.8} parent=0 // pred_region
    _
  $region5: #{tile.8} parent=0 // pred_fallthru
    _
  %v4 = vld [vmem:[%s0] ss:$0 sm:$0xff]
  %5 = vst [vmem:[%s1] sm:$0xff] %v4
  %s6 = scalar_lea.vmem %s1, 8
  %7 = vst [vmem:[%s6] sm:$0xff] %v4

// kernel: tile.9
$region0: #{tile.9}
  %s0 = inlined_call_operand.vmem [shape: f32[16,8], index: 0, kind: input, shape index: {}]
  %s1 = inlined_call_operand.vmem [shape: f32[1,128], index: 1, kind: output, shape index: {}]
  $region1: #{tile.9} parent=0
    #allocation0 [shape = 'u8[4096]{0}', space=vmem, size = 0x1000, scoped, tag = 'scoped mem for output reshape']
    %v2 = vld [vmem:[%s0] sm:$0x1]
    %vm3 = vcmask 64512
    %4 = vst.msk [vmem:[#allocation0] sm:$0x1] %vm3, %v2
    %s5 = scalar_lea.vmem %s0, 15
    %v6 = vld [vmem:[%s5] sm:$0x1]
    %7 = vrot.lane.b32.xlu0 %v6, 120
    %v8 = vpop.permute.xlu0 %7
    %vm9 = vcmask 1048512
    %10 = vst.msk [vmem:[#allocation0] sm:$0x1] %vm9, %v8
    %s11 = scalar_lea.vmem %s0, 14
    %v12 = vld [vmem:[%s11] sm:$0x1]
    %13 = vrot.lane.b32.xlu0 %v12, 112
    %v14 = vpop.permute.xlu0 %13
    %vm15 = vcmask 982912
    %16 = vst.msk [vmem:[#allocation0] sm:$0x1] %vm15, %v14
    %s17 = scalar_lea.vmem %s0, 13
    %v18 = vld [vmem:[%s17] sm:$0x1]
    %19 = vrot.lane.b32.xlu0 %v18, 104
    %v20 = vpop.permute.xlu0 %19
    %vm21 = vcmask 917312
    %22 = vst.msk [vmem:[#allocation0] sm:$0x1] %vm21, %v20
    %s23 = scalar_lea.vmem %s0, 12
    %v24 = vld [vmem:[%s23] sm:$0x1]
    %25 = vrot.lane.b32.xlu0 %v24, 96
    %v26 = vpop.permute.xlu0 %25
    %vm27 = vcmask 851712
    %28 = vst.msk [vmem:[#allocation0] sm:$0x1] %vm27, %v26
    %s29 = scalar_lea.vmem %s0, 11
    %v30 = vld [vmem:[%s29] sm:$0x1]
    %31 = vrot.lane.b32.xlu0 %v30, 88
    %v32 = vpop.permute.xlu0 %31
    %vm33 = vcmask 786112
    %34 = vst.msk [vmem:[#allocation0] sm:$0x1] %vm33, %v32
    %s35 = scalar_lea.vmem %s0, 10
    %v36 = vld [vmem:[%s35] sm:$0x1]
    %37 = vrot.lane.b32.xlu0 %v36, 80
    %v38 = vpop.permute.xlu0 %37
    %vm39 = vcmask 720512
    %40 = vst.msk [vmem:[#allocation0] sm:$0x1] %vm39, %v38
    %s41 = scalar_lea.vmem %s0, 9
    %v42 = vld [vmem:[%s41] sm:$0x1]
    %43 = vrot.lane.b32.xlu0 %v42, 72
    %v44 = vpop.permute.xlu0 %43
    %vm45 = vcmask 654912
    %46 = vst.msk [vmem:[#allocation0] sm:$0x1] %vm45, %v44
    %s47 = scalar_lea.vmem %s0, 8
    %v48 = vld [vmem:[%s47] sm:$0x1]
    %49 = vrot.lane.b32.xlu0 %v48, 64
    %v50 = vpop.permute.xlu0 %49
    %vm51 = vcmask 589312
    %52 = vst.msk [vmem:[#allocation0] sm:$0x1] %vm51, %v50
    %s53 = scalar_lea.vmem %s0, 7
    %v54 = vld [vmem:[%s53] sm:$0x1]
    %55 = vrot.lane.b32.xlu0 %v54, 56
    %v56 = vpop.permute.xlu0 %55
    %vm57 = vcmask 523712
    %58 = vst.msk [vmem:[#allocation0] sm:$0x1] %vm57, %v56
    %s59 = scalar_lea.vmem %s0, 6
    %v60 = vld [vmem:[%s59] sm:$0x1]
    %61 = vrot.lane.b32.xlu0 %v60, 48
    %v62 = vpop.permute.xlu0 %61
    %vm63 = vcmask 458112
    %64 = vst.msk [vmem:[#allocation0] sm:$0x1] %vm63, %v62
    %s65 = scalar_lea.vmem %s0, 5
    %v66 = vld [vmem:[%s65] sm:$0x1]
    %67 = vrot.lane.b32.xlu0 %v66, 40
    %v68 = vpop.permute.xlu0 %67
    %vm69 = vcmask 392512
    %70 = vst.msk [vmem:[#allocation0] sm:$0x1] %vm69, %v68
    %s71 = scalar_lea.vmem %s0, 4
    %v72 = vld [vmem:[%s71] sm:$0x1]
    %73 = vrot.lane.b32.xlu0 %v72, 32
    %v74 = vpop.permute.xlu0 %73
    %vm75 = vcmask 326912
    %76 = vst.msk [vmem:[#allocation0] sm:$0x1] %vm75, %v74
    %s77 = scalar_lea.vmem %s0, 3
    %v78 = vld [vmem:[%s77] sm:$0x1]
    %79 = vrot.lane.b32.xlu0 %v78, 24
    %v80 = vpop.permute.xlu0 %79
    %vm81 = vcmask 261312
    %82 = vst.msk [vmem:[#allocation0] sm:$0x1] %vm81, %v80
    %s83 = scalar_lea.vmem %s0, 2
    %v84 = vld [vmem:[%s83] sm:$0x1]
    %85 = vrot.lane.b32.xlu0 %v84, 16
    %v86 = vpop.permute.xlu0 %85
    %vm87 = vcmask 195712
    %88 = vst.msk [vmem:[#allocation0] sm:$0x1] %vm87, %v86
    %s89 = scalar_lea.vmem %s0, 1
    %v90 = vld [vmem:[%s89] sm:$0x1]
    %91 = vrot.lane.b32.xlu0 %v90, 8
    %v92 = vpop.permute.xlu0 %91
    %vm93 = vcmask 130112
    %94 = vst.msk [vmem:[#allocation0] sm:$0x1] %vm93, %v92
    %s96 = ssub.s32 2, 1
    %v97 = vld [vmem:[#allocation0] sm:%s96]
    %s99 = ssub.s32 2, 1
    %100 = vst [vmem:[%s1] sm:%s99] %v97

// kernel: down_shifted_conv2d_pallas.1
$region0: #{down_shifted_conv2d_pallas.1}
  #allocation0 [shape = 'u32[]', space=smem, size = 0x4, offset = 0x4, fixed_abs, tag = 'smem constant byte address 0x4 - core index']
  #allocation1 [shape = 'u32[72,128]{1,0:T(1,128)}', space=vmem, size = 0x9000, scoped, tag = 'internal scratch']
  %s0 = inlined_call_operand.vmem [shape: bf16[2,16,144], index: 0, kind: input, shape index: {}]
  %s1 = inlined_call_operand.vmem [shape: bf16[144,128], index: 1, kind: input, shape index: {}]
  %s2 = inlined_call_operand.vmem [shape: f32[1,128], index: 2, kind: input, shape index: {}]
  %s3 = inlined_call_operand.vmem [shape: f32[2,16,128], index: 3, kind: output, shape index: {}]
  %s4 = sld [smem:[#allocation0]]
  $region45: #{down_shifted_conv2d_pallas.1} parent=0
    _
  %s6 = ssub.s32 1, %s4
  %s7 = scalar_select 0, %s6, %s4
  loop: start=0, step=1, limit=4
  $region2: #{down_shifted_conv2d_pallas.1} parent=0 // loop_pre_header
    _
  $region3: #{down_shifted_conv2d_pallas.1} parent=0 // loop_header
    %s9 = sphi 0, %s13
    %p10 = scmp.ge.s32.totalorder %s9, 4
    %s16 = sphi 0, %s35
    %s17 = sphi 0, %s31
    %s18 = sphi 0, %s27
    %s19 = sphi 0, %s16
    %s20 = sphi 0, %s17
    %s21 = sphi 0, %s18
    %s22 = sphi 0, %s19
    %s23 = sphi 0, %s20
    %s24 = sphi 0, %s21
    %s40 = sphi 0, %s42
    %s43 = sphi 0, %s40
    %s44 = sphi 0, %s43
    %s60 = sphi 0, %s44
    %s66 = sphi 0, %s68
    %s69 = sphi 0, %s66
    %s70 = sphi 0, %s69
    %s86 = sphi 0, %s70
    %s92 = sphi 0, %s94
    %s95 = sphi 0, %s92
    %s96 = sphi 0, %s95
    %s112 = sphi 0, %s96
    %s122 = sphi 0, %s124
    %s125 = sphi 0, %s122
    %s126 = sphi 0, %s125
    %s142 = sphi 0, %s126
  $region4: #{down_shifted_conv2d_pallas.1} parent=0 // loop_header_branch
    %12 = sbr.rel (%p10) target = $region8
  $region5: #{down_shifted_conv2d_pallas.1} parent=0 // loop_body
    %s14 = ssub.s32 %s9, 1
    %s15 = ssub.s32 %s9, 2
    %s25 = sadd.s32 1, %s18
    %p26 = scmp.ge.s32.totalorder %s25, 1
    %s27 = scalar_select %p26, 0, %s25
    %s28 = sadd.s32 1, %s17
    %s29 = scalar_select %p26, %s28, %s17
    %p30 = scmp.ge.s32.totalorder %s29, 1
    %s31 = scalar_select %p30, 0, %s29
    %s32 = sadd.s32 1, %s16
    %s33 = scalar_select %p30, %s32, %s16
    %p34 = scmp.ge.s32.totalorder %s33, 2
    %s35 = scalar_select %p34, 0, %s33
    %s36 = ssub.s32 %s16, %s35
    %s37 = ssub.s32 %s17, %s31
    %s38 = sor.u32 %s36, %s37
    %p39 = scmp.eq.s32.totalorder %s38, 0
    %s41 = sadd.s32 %s40, 1
    %s42 = scalar_select %p39, %s40, %s41
    %p45 = pneg %p39
    %p46 = scmp.eq.s32.totalorder %s9, 1
    %p47 = por %p45, %p46
    %p48 = scmp.ne.s32.totalorder %s40, %s43
    %p49 = scmp.eq.s32.totalorder %s9, 0
    %p50 = por %p48, %p49
    %p51 = scmp.ne.s32.totalorder %s40, %s43
    %p52 = scmp.eq.s32.totalorder %s14, 1
    %p53 = por %p51, %p52
    %p54 = scmp.ne.s32.totalorder %s43, %s44
    %p55 = scmp.eq.s32.totalorder %s14, 0
    %p56 = por %p54, %p55
    %p57 = scmp.ne.s32.totalorder %s43, %s44
    %p58 = scmp.eq.s32.totalorder %s15, 1
    %p59 = por %p57, %p58
    %p61 = scmp.ne.s32.totalorder %s44, %s60
    %p62 = scmp.eq.s32.totalorder %s15, 0
    %p63 = por %p61, %p62
    %s64 = ssub.s32 %s18, %s27
    %p65 = scmp.eq.s32.totalorder %s64, 0
    %s67 = sadd.s32 %s66, 1
    %s68 = scalar_select %p65, %s66, %s67
    %p71 = pneg %p65
    %p72 = scmp.eq.s32.totalorder %s9, 1
    %p73 = por %p71, %p72
    %p74 = scmp.ne.s32.totalorder %s66, %s69
    %p75 = scmp.eq.s32.totalorder %s9, 0
    %p76 = por %p74, %p75
    %p77 = scmp.ne.s32.totalorder %s66, %s69
    %p78 = scmp.eq.s32.totalorder %s14, 1
    %p79 = por %p77, %p78
    %p80 = scmp.ne.s32.totalorder %s69, %s70
    %p81 = scmp.eq.s32.totalorder %s14, 0
    %p82 = por %p80, %p81
    %p83 = scmp.ne.s32.totalorder %s69, %s70
    %p84 = scmp.eq.s32.totalorder %s15, 1
    %p85 = por %p83, %p84
    %p87 = scmp.ne.s32.totalorder %s70, %s86
    %p88 = scmp.eq.s32.totalorder %s15, 0
    %p89 = por %p87, %p88
    %s90 = ssub.s32 %s18, %s27
    %p91 = scmp.eq.s32.totalorder %s90, 0
    %s93 = sadd.s32 %s92, 1
    %s94 = scalar_select %p91, %s92, %s93
    %p97 = pneg %p91
    %p98 = scmp.eq.s32.totalorder %s9, 1
    %p99 = por %p97, %p98
    %p100 = scmp.ne.s32.totalorder %s92, %s95
    %p101 = scmp.eq.s32.totalorder %s9, 0
    %p102 = por %p100, %p101
    %p103 = scmp.ne.s32.totalorder %s92, %s95
    %p104 = scmp.eq.s32.totalorder %s14, 1
    %p105 = por %p103, %p104
    %p106 = scmp.ne.s32.totalorder %s95, %s96
    %p107 = scmp.eq.s32.totalorder %s14, 0
    %p108 = por %p106, %p107
    %p109 = scmp.ne.s32.totalorder %s95, %s96
    %p110 = scmp.eq.s32.totalorder %s15, 1
    %p111 = por %p109, %p110
    %p113 = scmp.ne.s32.totalorder %s96, %s112
    %p114 = scmp.eq.s32.totalorder %s15, 0
    %p115 = por %p113, %p114
    %s116 = ssub.s32 %s16, %s35
    %s117 = ssub.s32 %s17, %s31
    %s118 = sor.u32 %s116, %s117
    %s119 = ssub.s32 %s18, %s27
    %s120 = sor.u32 %s118, %s119
    %p121 = scmp.eq.s32.totalorder %s120, 0
    %s123 = sadd.s32 %s122, 1
    %s124 = scalar_select %p121, %s122, %s123
    %p127 = pneg %p121
    %p128 = scmp.eq.s32.totalorder %s9, 1
    %p129 = por %p127, %p128
    %p130 = scmp.ne.s32.totalorder %s122, %s125
    %p131 = scmp.eq.s32.totalorder %s9, 0
    %p132 = por %p130, %p131
    %p133 = scmp.ne.s32.totalorder %s122, %s125
    %p134 = scmp.eq.s32.totalorder %s14, 1
    %p135 = por %p133, %p134
    %p136 = scmp.ne.s32.totalorder %s125, %s126
    %p137 = scmp.eq.s32.totalorder %s14, 0
    %p138 = por %p136, %p137
    %p139 = scmp.ne.s32.totalorder %s125, %s126
    %p140 = scmp.eq.s32.totalorder %s15, 1
    %p141 = por %p139, %p140
    %p143 = scmp.ne.s32.totalorder %s126, %s142
    %p144 = scmp.eq.s32.totalorder %s15, 0
    %p145 = por %p143, %p144
    %p146 = scmp.le.s32.totalorder 1, %s9
    %p147 = scmp.lt.s32.totalorder %s9, 3
    %p148 = pnand %p146, %p147
    %p149 = pneg %p148
    // Predicated region
    $region9: #{down_shifted_conv2d_pallas.1} parent=5 // pred_check
      _
    $region10: #{down_shifted_conv2d_pallas.1} parent=5 // pred_check_branch
      %151 = sbr.rel (%p148) target = $region12
    $region11: #{down_shifted_conv2d_pallas.1} parent=5 // pred_region
      %s152 = ssub.s32 %s9, 1
      // Predicated region
      $region13: #{down_shifted_conv2d_pallas.1} parent=11 // pred_check
        %p153 = pneg %p82
      $region14: #{down_shifted_conv2d_pallas.1} parent=11 // pred_check_branch
        %155 = sbr.rel (%p153) target = $region16
      $region15: #{down_shifted_conv2d_pallas.1} parent=11 // pred_region
        %p156 = scmp.lt.s32.totalorder %s21, 0
        %s157 = scalar_select %p156, %s21, 0
        %s158 = smul.addr %s157, 4
        %s159 = scalar_lea.vmem %s1, %s158
      $region16: #{down_shifted_conv2d_pallas.1} parent=11 // pred_fallthru
        _
      // Predicated region
      $region17: #{down_shifted_conv2d_pallas.1} parent=11 // pred_check
        %p160 = pneg %p108
      $region18: #{down_shifted_conv2d_pallas.1} parent=11 // pred_check_branch
        %162 = sbr.rel (%p160) target = $region20
      $region19: #{down_shifted_conv2d_pallas.1} parent=11 // pred_region
        %p163 = scmp.lt.s32.totalorder %s21, 0
        %s164 = scalar_select %p163, %s21, 0
        %s165 = scalar_lea.vmem %s2, %s164
      $region20: #{down_shifted_conv2d_pallas.1} parent=11 // pred_fallthru
        _
    $region12: #{down_shifted_conv2d_pallas.1} parent=5 // pred_fallthru
      _
    %p166 = scmp.lt.s32.totalorder %s9, 2
    // Predicated region
    $region21: #{down_shifted_conv2d_pallas.1} parent=5 // pred_check
      %p167 = pneg %p166
    $region22: #{down_shifted_conv2d_pallas.1} parent=5 // pred_check_branch
      %169 = sbr.rel (%p167) target = $region24
    $region23: #{down_shifted_conv2d_pallas.1} parent=5 // pred_region
      // Predicated region
      $region25: #{down_shifted_conv2d_pallas.1} parent=23 // pred_check
        %p170 = pneg %p50
      $region26: #{down_shifted_conv2d_pallas.1} parent=23 // pred_check_branch
        %172 = sbr.rel (%p170) target = $region28
      $region27: #{down_shifted_conv2d_pallas.1} parent=23 // pred_region
        %s173 = smul.u32 2, %s17
        %p174 = scmp.lt.s32.totalorder %s16, 1
        %s175 = scalar_select %p174, %s16, 1
        %p176 = scmp.lt.s32.totalorder %s173, 1
        %s177 = scalar_select %p176, %s173, 1
        %s178 = smul.addr %s177, 2
        %s179 = smul.addr %s175, 4
        %s180 = sadd.s32 %s178, %s179
        %s181 = smul.addr %s180, 4
        %s182 = scalar_lea.vmem %s0, %s181
        %s183 = smul.u32 2, %s17
      $region28: #{down_shifted_conv2d_pallas.1} parent=23 // pred_fallthru
        _
    $region24: #{down_shifted_conv2d_pallas.1} parent=5 // pred_fallthru
      _
    %p184 = scmp.le.s32.totalorder 1, %s9
    %p185 = scmp.lt.s32.totalorder %s9, 3
    %p186 = pnand %p184, %p185
    %p187 = pneg %p186
    // Predicated region
    $region29: #{down_shifted_conv2d_pallas.1} parent=5 // pred_check
      _
    $region30: #{down_shifted_conv2d_pallas.1} parent=5 // pred_check_branch
      %189 = sbr.rel (%p186) target = $region32
    $region31: #{down_shifted_conv2d_pallas.1} parent=5 // pred_region
      %s190 = ssub.s32 %s9, 1
      %s191 = smul.u32 2, %s20
      %p192 = scmp.lt.s32.totalorder %s19, 1
      %s193 = scalar_select %p192, %s19, 1
      %p194 = scmp.lt.s32.totalorder %s191, 1
      %s195 = scalar_select %p194, %s191, 1
      %s196 = smul.addr %s195, 2
      %s197 = smul.addr %s193, 4
      %s198 = sadd.s32 %s196, %s197
      %s199 = smul.addr %s198, 4
      %s200 = scalar_lea.vmem %s0, %s199
      %p201 = pneg %p56
      %p202 = pneg %p53
      %p203 = scmp.lt.s32.totalorder %s21, 0
      %s204 = scalar_select %p203, %s21, 0
      %s205 = smul.addr %s204, 4
      %s206 = scalar_lea.vmem %s1, %s205
      %p207 = pneg %p82
      %p208 = pneg %p79
      %p209 = scmp.lt.s32.totalorder %s21, 0
      %s210 = scalar_select %p209, %s21, 0
      %s211 = scalar_lea.vmem %s2, %s210
      %p212 = pneg %p108
      %p213 = pneg %p105
      %p214 = pneg %p138
      %p215 = pneg %p135
      %s216 = smul.u32 2, %s20
      %p217 = scmp.lt.s32.totalorder %s19, 1
      %s218 = scalar_select %p217, %s19, 1
      %p219 = scmp.lt.s32.totalorder %s216, 1
      %s220 = scalar_select %p219, %s216, 1
      %p221 = scmp.lt.s32.totalorder %s21, 0
      %s222 = scalar_select %p221, %s21, 0
      %s223 = sadd.s32 %s222, %s220
      %s224 = smul.addr %s218, 2
      %s225 = sadd.s32 %s223, %s224
      %s226 = smul.addr %s225, 8
      %s227 = scalar_lea.vmem %s3, %s226
      %s228 = smul.u32 2, %s20
      %p229 = scmp.lt.s32.totalorder %s19, 1
      %s230 = scalar_select %p229, %s19, 1
      %p231 = scmp.lt.s32.totalorder %s228, 1
      %s232 = scalar_select %p231, %s228, 1
      %s233 = smul.addr %s232, 2
      %s234 = smul.addr %s230, 4
      %s235 = sadd.s32 %s233, %s234
      %s236 = smul.addr %s235, 4
      %s237 = scalar_lea.vmem %s0, %s236
      %s238 = smul.u32 2, %s20
      %p239 = scmp.lt.s32.totalorder %s21, 0
      %s240 = scalar_select %p239, %s21, 0
      %s241 = smul.addr %s240, 4
      %s242 = scalar_lea.vmem %s1, %s241
      %p243 = scmp.lt.s32.totalorder %s21, 0
      %s244 = scalar_select %p243, %s21, 0
      %s245 = scalar_lea.vmem %s2, %s244
      %s246 = smul.u32 2, %s20
      %p247 = scmp.lt.s32.totalorder %s19, 1
      %s248 = scalar_select %p247, %s19, 1
      %p249 = scmp.lt.s32.totalorder %s246, 1
      %s250 = scalar_select %p249, %s246, 1
      %p251 = scmp.lt.s32.totalorder %s21, 0
      %s252 = scalar_select %p251, %s21, 0
      %s253 = sadd.s32 %s252, %s250
      %s254 = smul.addr %s248, 2
      %s255 = sadd.s32 %s253, %s254
      %s256 = smul.addr %s255, 8
      %s257 = scalar_lea.vmem %s3, %s256
      %s258 = smul.u32 2, %s20
      %v260 = vld [vmem:[%s237] sm:$0xff]
      %v261 = vld [vmem:[%s237 + $0x8] sm:$0xff]
      %v262 = vld [vmem:[%s242] sm:$0xf]
      %v263 = vld [vmem:[%s242 + $0x4] sm:$0xf]
      %v264 = vld [vmem:[%s242 + $0x8] sm:$0xf]
      %v265 = vld [vmem:[%s242 + $0xc] sm:$0xf]
      %v266 = vld [vmem:[%s242 + $0x10] sm:$0xf]
      %v267 = vld [vmem:[%s242 + $0x14] sm:$0xf]
      %v268 = vld [vmem:[%s242 + $0x18] sm:$0xf]
      %v269 = vld [vmem:[%s242 + $0x1c] sm:$0xf]
      %v270 = vld [vmem:[%s242 + $0x20] sm:$0xf]
      %v271 = vld [vmem:[%s242 + $0x24] sm:$0xf]
      %v272 = vld [vmem:[%s242 + $0x28] sm:$0xf]
      %v273 = vld [vmem:[%s242 + $0x2c] sm:$0xf]
      %v274 = vld [vmem:[%s242 + $0x30] sm:$0xf]
      %v275 = vld [vmem:[%s242 + $0x34] sm:$0xf]
      %v276 = vld [vmem:[%s242 + $0x38] sm:$0xf]
      %v277 = vld [vmem:[%s242 + $0x3c] sm:$0xf]
      %v278 = vld [vmem:[%s242 + $0x40] sm:$0xf]
      %v279 = vld [vmem:[%s242 + $0x44] sm:$0xf]
      %v280 = vld [vmem:[%s245] sm:$0x1]
      %v282 = vperm.slane %v280, 0
      %v286 = vunpack.c.l.b16 %v260
      %v287 = vunpack.c.h.b16 %v260
      %v288 = vunpack.c.l.b16 %v261
      %v289 = vunpack.c.h.b16 %v261
      %v290 = vpack.c.b16 %v288, %v286
      %v291 = vpack.c.b16 %v289, %v287
      %v311 = vunpack.c.l.b16 %v262
      %v312 = vunpack.c.l.b16 %v263
      %v313 = vunpack.c.l.b16 %v264
      %v314 = vunpack.c.l.b16 %v265
      %v315 = vunpack.c.l.b16 %v266
      %v316 = vunpack.c.l.b16 %v267
      %v317 = vunpack.c.l.b16 %v268
      %v318 = vunpack.c.l.b16 %v269
      %v319 = vunpack.c.l.b16 %v270
      %v320 = vunpack.c.l.b16 %v271
      %v321 = vunpack.c.l.b16 %v272
      %v322 = vunpack.c.l.b16 %v273
      %v323 = vunpack.c.l.b16 %v274
      %v324 = vunpack.c.l.b16 %v275
      %v325 = vunpack.c.l.b16 %v276
      %v326 = vunpack.c.l.b16 %v277
      %v327 = vunpack.c.l.b16 %v278
      %v328 = vunpack.c.l.b16 %v279
      %v329 = vpack.c.b16 %v312, %v311
      %v330 = vpack.c.b16 %v314, %v313
      %v331 = vpack.c.b16 %v316, %v315
      %v332 = vpack.c.b16 %v318, %v317
      %v333 = vpack.c.b16 %v320, %v319
      %v334 = vpack.c.b16 %v322, %v321
      %v335 = vpack.c.b16 %v324, %v323
      %v336 = vpack.c.b16 %v326, %v325
      %v337 = vpack.c.b16 %v328, %v327
      %vm347 = vcmask 130048
      %v349 = vsel %vm347, %v291, 0
      %351 = vmatpush.bf16.msra.mxu0 %v336
      %352 = vmatpush.bf16.msra.mxu0 %v335
      %353 = vmatpush.bf16.msra.mxu0 %v334
      %354 = vmatpush.bf16.msra.mxu0 %v333
      %355 = vmatpush.bf16.msra.mxu0 %v332
      %356 = vmatpush.bf16.msra.mxu0 %v331
      %357 = vmatpush.bf16.msra.mxu0 %v330
      %358 = vmatpush.bf16.msra.mxu0 %v329
      %359 = vmatmul.bf16.gmra.mxu0 %v290
      %v360 = vpop.f32.mrf.mxu0
      %v361 = vadd.f32 %v282, %v360
      %v362 = vpop.f32.mrf.mxu0
      %v363 = vadd.f32 %v282, %v362
      %364 = vdwg.mxu0
      %365 = vmatpush.bf16.msra.mxu0 0
      %366 = vmatpush.bf16.msra.mxu0 0
      %367 = vmatpush.bf16.msra.mxu0 0
      %368 = vmatpush.bf16.msra.mxu0 0
      %369 = vmatpush.bf16.msra.mxu0 0
      %370 = vmatpush.bf16.msra.mxu0 0
      %371 = vmatpush.bf16.msra.mxu0 0
      %372 = vmatpush.bf16.msra.mxu0 %v337
      %373 = vmatmul.bf16.gmra.mxu0 %v349
      %v374 = vpop.f32.mrf.mxu0
      %v375 = vadd.f32 %v361, %v374
      %v376 = vpop.f32.mrf.mxu0
      %v377 = vadd.f32 %v363, %v376
      %378 = vdwg.mxu0
      %379 = vst [vmem:[%s257] sm:$0xff] %v375
      %380 = vst [vmem:[%s257 + $0x8] sm:$0xff] %v377
      %s381 = smul.u32 2, %s20
      %p382 = scmp.lt.s32.totalorder %s19, 1
      %s383 = scalar_select %p382, %s19, 1
      %p384 = scmp.lt.s32.totalorder %s381, 1
      %s385 = scalar_select %p384, %s381, 1
      %p386 = scmp.lt.s32.totalorder %s21, 0
      %s387 = scalar_select %p386, %s21, 0
      %s388 = sadd.s32 %s387, %s385
      %s389 = smul.addr %s383, 2
      %s390 = sadd.s32 %s388, %s389
      %s391 = smul.addr %s390, 8
      %s392 = scalar_lea.vmem %s3, %s391
      // Predicated region
      $region33: #{down_shifted_conv2d_pallas.1} parent=31 // pred_check
        %p393 = pneg %p135
      $region34: #{down_shifted_conv2d_pallas.1} parent=31 // pred_check_branch
        %395 = sbr.rel (%p393) target = $region36
      $region35: #{down_shifted_conv2d_pallas.1} parent=31 // pred_region
        %s396 = smul.u32 2, %s20
      $region36: #{down_shifted_conv2d_pallas.1} parent=31 // pred_fallthru
        _
    $region32: #{down_shifted_conv2d_pallas.1} parent=5 // pred_fallthru
      _
    %p397 = scmp.le.s32.totalorder 2, %s9
    // Predicated region
    $region37: #{down_shifted_conv2d_pallas.1} parent=5 // pred_check
      %p398 = pneg %p397
    $region38: #{down_shifted_conv2d_pallas.1} parent=5 // pred_check_branch
      %400 = sbr.rel (%p398) target = $region40
    $region39: #{down_shifted_conv2d_pallas.1} parent=5 // pred_region
      %s401 = ssub.s32 %s9, 2
      // Predicated region
      $region41: #{down_shifted_conv2d_pallas.1} parent=39 // pred_check
        %p402 = pneg %p141
      $region42: #{down_shifted_conv2d_pallas.1} parent=39 // pred_check_branch
        %404 = sbr.rel (%p402) target = $region44
      $region43: #{down_shifted_conv2d_pallas.1} parent=39 // pred_region
        %s405 = smul.u32 2, %s23
        %p406 = scmp.lt.s32.totalorder %s22, 1
        %s407 = scalar_select %p406, %s22, 1
        %p408 = scmp.lt.s32.totalorder %s405, 1
        %s409 = scalar_select %p408, %s405, 1
        %p410 = scmp.lt.s32.totalorder %s24, 0
        %s411 = scalar_select %p410, %s24, 0
        %s412 = sadd.s32 %s411, %s409
        %s413 = smul.addr %s407, 2
        %s414 = sadd.s32 %s412, %s413
        %s415 = smul.addr %s414, 8
        %s416 = scalar_lea.vmem %s3, %s415
      $region44: #{down_shifted_conv2d_pallas.1} parent=39 // pred_fallthru
        _
    $region40: #{down_shifted_conv2d_pallas.1} parent=5 // pred_fallthru
      _
  $region6: #{down_shifted_conv2d_pallas.1} parent=0 // loop_footer
    %s13 = sadd.s32 1, %s9
  $region7: #{down_shifted_conv2d_pallas.1} parent=0 // loop_footer_branch
    %8 = sbr.rel target = $region3
  $region8: #{down_shifted_conv2d_pallas.1} parent=0 // loop_exit
    _

</llo_original>
